<compile_context>
chip_gen: v5e
topology: v5e:2x2
jax: 0.10.0
libtpu: 0.0.40
codegen_flags: <defaults>
</compile_context>

<pallas_src>
import functools
import numpy as np
import jax
import jax.numpy as jnp
from jax.experimental import pallas as pl
from jax.experimental.pallas import tpu as pltpu

EPS = 1e-6      # module-level eps (masking / loss)
LN_EPS = 1e-5   # nn.LayerNorm default eps
NEG_BIG = -1e9  # additive attention mask bias

# scoped VMEM budget: ~5/8 of physical capacity (headroom for compiler scratch)
try:
    _VMEM_CAP = int(pltpu.get_tpu_info().vmem_capacity_bytes)
except Exception:
    _VMEM_CAP = 128 * 1024 * 1024
_VMEM_LIMIT = int(_VMEM_CAP * 5 // 8)


def _cparams(semantics):
    return pltpu.CompilerParams(dimension_semantics=semantics,
                                vmem_limit_bytes=_VMEM_LIMIT)


# -----------------------------------------------------------------------------
# small in-kernel helpers
# -----------------------------------------------------------------------------
def _ln(x, g, b):
    mu = jnp.mean(x, axis=-1, keepdims=True)
    var = jnp.mean((x - mu) ** 2, axis=-1, keepdims=True)
    return (x - mu) * jax.lax.rsqrt(var + LN_EPS) * g + b


def _erf(x):
    # f32 erf approximation (Abramowitz & Stegun 7.1.26); reciprocal on the EUP.
    ax = jnp.abs(x)
    t = pl.reciprocal(1.0 + 0.3275911 * ax, approx=True)
    poly = ((((1.061405429 * t - 1.453152027) * t + 1.421413741) * t
             - 0.284496736) * t + 0.254829592) * t
    y = 1.0 - poly * jnp.exp(-ax * ax)
    return jnp.where(x >= 0.0, y, -y)


def _gelu_exact(x):
    # matches nn.GELU(approximate='none') = 0.5 * x * (1 + erf(x / sqrt(2)))
    return 0.5 * x * (1.0 + _erf(x * 0.7071067811865476))


# -----------------------------------------------------------------------------
# Pallas kernels
# -----------------------------------------------------------------------------
def embed_kernel(d_ref, w_ref, b_ref, pos_ref, o_ref):
    # MaskEmbed: Conv1d(1, D, k=1) -> x[n,l,d] = data[n,l]*w[d] + b[d], fused with
    # "+ pos_embed[:, 1:, :]". data comes in as a dense (nb, L) block.
    d = d_ref[...]                                           # (nb, L)
    o_ref[...] = (d[:, :, None] * w_ref[...][None, :, :]
                  + b_ref[...][None, :, :]
                  + pos_ref[...][None, :, :])


def _encoder_final(out2, NB, S, g_ref, b_ref, w_ref, bb_ref, o_ref):
    # fused: encoder final LayerNorm -> decoder_embed Linear (runs on last layer)
    h = _ln(out2, g_ref[...], b_ref[...]).astype(jnp.bfloat16)
    y = jnp.dot(h, w_ref[...], preferred_element_type=jnp.float32) + bb_ref[...]
    o_ref[...] = y.reshape(NB, S, o_ref.shape[-1])


def _decoder_final(out2, NB, S, g_ref, b_ref, w_ref, bb_ref, o_ref):
    # fused: decoder_norm -> decoder_pred (D->1 lane reduce) -> tanh/2 + 0.5
    D = out2.shape[-1]
    h = _ln(out2.reshape(NB, S, D), g_ref[...], b_ref[...])
    y = jnp.sum(h * w_ref[...][None, :, :], axis=-1) + bb_ref[...]   # (NB, S)
    o_ref[...] = (jnp.tanh(y) * 0.5 + 0.5).reshape(NB, 1, S)


def stack_kernel(x_ref, bias_ref,
                 g1_ref, b1_ref, wq_ref, bq_ref, wk_ref, bk_ref,
                 wv_ref, bv_ref, wp_ref, bp_ref, g2_ref, b2_ref,
                 w1_ref, bm1_ref, w2_ref, bm2_ref,
                 fg_ref, fb_ref, fw_ref, fbb_ref,
                 o_ref, res_ref, *, num_heads, final_fn):
    # grid = (batch_tile, layer). The residual lives in res_ref (VMEM) across the
    # layer axis; per-layer weights are selected by the layer index of the grid.
    NB, S, D = res_ref.shape
    H = num_heads
    hd = D // H
    layer = pl.program_id(1)

    @pl.when(layer == 0)
    def _init():
        res_ref[...] = x_ref[...]

    x2 = res_ref[...].reshape(NB * S, D)                     # fold (N*S) onto sublanes
    bias = bias_ref[...]                                     # (NB, 1, S) additive mask
    bias_h = jnp.concatenate([bias] * H, axis=0)             # (H*NB, 1, S), head-major

    # --- attention branch (pre-LN); 1/sqrt(hd) already folded into wq at init ---
    h = _ln(x2, g1_ref[...], b1_ref[...]).astype(jnp.bfloat16)
    q = jnp.dot(h, wq_ref[...], preferred_element_type=jnp.float32) + bq_ref[...]
    k = jnp.dot(h, wk_ref[...], preferred_element_type=jnp.float32) + bk_ref[...]
    v = jnp.dot(h, wv_ref[...], preferred_element_type=jnp.float32) + bv_ref[...]

    def to_heads(t):  # (NB*S, D) -> (H*NB, S, hd), head-major batch (no transpose)
        t3 = t.reshape(NB, S, D).astype(jnp.bfloat16)
        return jnp.concatenate(
            [t3[:, :, i * hd:(i + 1) * hd] for i in range(H)], axis=0)

    qh, kh, vh = to_heads(q), to_heads(k), to_heads(v)
    att = jnp.einsum('bqd,bkd->bqk', qh, kh,
                     preferred_element_type=jnp.float32) + bias_h   # (H*NB, S, S)
    att = att - jnp.max(att, axis=-1, keepdims=True)
    p = jnp.exp(att)
    p = p * pl.reciprocal(jnp.sum(p, axis=-1, keepdims=True), approx=True)
    oh = jnp.einsum('bqk,bkd->bqd', p.astype(jnp.bfloat16), vh,
                    preferred_element_type=jnp.float32)             # (H*NB, S, hd)
    # lane-dense head re-assembly (single concat), then the output projection
    xa = jnp.concatenate([oh[i * NB:(i + 1) * NB] for i in range(H)],
                         axis=-1).reshape(NB * S, D)
    xa = jnp.dot(xa.astype(jnp.bfloat16), wp_ref[...],
                 preferred_element_type=jnp.float32) + bp_ref[...]
    x2 = x2 + xa

    # --- MLP branch ---
    m = _ln(x2, g2_ref[...], b2_ref[...]).astype(jnp.bfloat16)
    m = jnp.dot(m, w1_ref[...], preferred_element_type=jnp.float32) + bm1_ref[...]
    m = _gelu_exact(m).astype(jnp.bfloat16)
    m = jnp.dot(m, w2_ref[...], preferred_element_type=jnp.float32) + bm2_ref[...]
    out2 = x2 + m

    res_ref[...] = out2.reshape(NB, S, D)

    @pl.when(layer == pl.num_programs(1) - 1)
    def _final():
        final_fn(out2, NB, S, fg_ref, fb_ref, fw_ref, fbb_ref, o_ref)


def loss_kernel(t_ref, p_ref, m_ref, n_ref, o_ref, acc_ref):
    i = pl.program_id(0)

    @pl.when(i == 0)
    def _init():
        acc_ref[0] = jnp.float32(0.0)
        acc_ref[1] = jnp.float32(0.0)
        acc_ref[2] = jnp.float32(0.0)
        acc_ref[3] = jnp.float32(0.0)

    le = (p_ref[...] - t_ref[...]) ** 2
    acc_ref[0] += jnp.sum(le * m_ref[...])
    acc_ref[1] += jnp.sum(m_ref[...])
    acc_ref[2] += jnp.sum(le * n_ref[...])
    acc_ref[3] += jnp.sum(n_ref[...])

    @pl.when(i == pl.num_programs(0) - 1)
    def _finalize():
        o_ref[0, 0] = (acc_ref[0] / jnp.maximum(acc_ref[1], EPS)
                       + acc_ref[2] / jnp.maximum(acc_ref[3], EPS))


# -----------------------------------------------------------------------------
# Pallas wrappers
# -----------------------------------------------------------------------------
def _pad_batch(x, nb):
    npad = (-x.shape[0]) % nb
    if npad:
        widths = [(0, npad)] + [(0, 0)] * (x.ndim - 1)
        x = jnp.pad(x, widths)
    return x


def _pad_for_blocks(x, attn_mask, nb):
    # pad sequence to a multiple of 8 (sublane alignment) and batch to a multiple
    # of nb; padded keys get an additive bias of NEG_BIG, padded rows sliced off.
    N, S, _ = x.shape
    sp = (-S) % 8
    npad = (-N) % nb
    if sp or npad:
        x = jnp.pad(x, ((0, npad), (0, sp), (0, 0)))
        attn_mask = jnp.pad(attn_mask, ((0, npad), (0, sp)))
    Np, Sp = N + npad, S + sp
    bias = jnp.where(attn_mask > 0.5, 0.0, NEG_BIG).astype(jnp.float32)
    return x, bias.reshape(Np, 1, Sp)


def mask_embed_pos(data_nl, w, b, pos, nb):
    N, L = data_nl.shape
    D = w.shape[1]
    dp = _pad_batch(data_nl, nb)
    Np = dp.shape[0]
    out = pl.pallas_call(
        embed_kernel,
        out_shape=jax.ShapeDtypeStruct((Np, L, D), jnp.float32),
        grid=(Np // nb,),
        in_specs=[pl.BlockSpec((nb, L), lambda n: (n, 0)),
                  pl.BlockSpec((1, D), lambda n: (0, 0)),
                  pl.BlockSpec((1, D), lambda n: (0, 0)),
                  pl.BlockSpec((L, D), lambda n: (0, 0))],
        out_specs=pl.BlockSpec((nb, L, D), lambda n: (n, 0, 0)),
        compiler_params=_cparams(("parallel",)),
    )(dp, w, b, pos)
    return out[:N]


def transformer_stack(x, bias, sp, fg, fb, fw, fbb, num_heads, nb,
                      final_fn, out_tail):
    # x: (Np, S, D) f32 residual input; bias: (Np, 1, S) additive key mask.
    # sp: per-layer params stacked along axis 0; fg/fb/fw/fbb: final-stage params.
    Np, S, D = x.shape
    depth = sp['wq'].shape[0]
    Dh = sp['w1'].shape[-1]
    grid = (Np // nb, depth)

    def tile3(shape):
        return pl.BlockSpec(shape, lambda n, l: (n, 0, 0))

    def layer(a, b):
        return pl.BlockSpec((None, a, b), lambda n, l: (l, 0, 0))

    def const(shape):
        return pl.BlockSpec(shape, lambda n, l: (0,) * len(shape))

    in_specs = [tile3((nb, S, D)), tile3((nb, 1, S)),
                layer(1, D), layer(1, D),                    # g1, b1
                layer(D, D), layer(1, D),                    # wq, bq
                layer(D, D), layer(1, D),                    # wk, bk
                layer(D, D), layer(1, D),                    # wv, bv
                layer(D, D), layer(1, D),                    # wp, bp
                layer(1, D), layer(1, D),                    # g2, b2
                layer(D, Dh), layer(1, Dh),                  # w1, bm1
                layer(Dh, D), layer(1, D),                   # w2, bm2
                const(fg.shape), const(fb.shape),
                const(fw.shape), const(fbb.shape)]

    out_shape = jax.ShapeDtypeStruct((Np,) + out_tail, jnp.float32)
    out_spec = pl.BlockSpec((nb,) + out_tail,
                            lambda n, l: (n,) + (0,) * len(out_tail))

    kern = functools.partial(stack_kernel, num_heads=num_heads, final_fn=final_fn)
    return pl.pallas_call(
        kern,
        out_shape=out_shape,
        grid=grid,
        in_specs=in_specs,
        out_specs=out_spec,
        scratch_shapes=[pltpu.VMEM((nb, S, D), jnp.float32)],
        compiler_params=_cparams(("parallel", "arbitrary")),
    )(x, bias,
      sp['g1'], sp['b1'], sp['wq'], sp['bq'], sp['wk'], sp['bk'],
      sp['wv'], sp['bv'], sp['wp'], sp['bp'], sp['g2'], sp['b2'],
      sp['w1'], sp['bm1'], sp['w2'], sp['bm2'],
      fg, fb, fw, fbb)


def masked_mse_loss(target, pred, mask, nask, nb):
    N, L = target.shape
    target = _pad_batch(target, nb)
    pred = _pad_batch(pred, nb)
    mask = _pad_batch(mask, nb)
    nask = _pad_batch(nask, nb)
    Np = target.shape[0]
    spec = pl.BlockSpec((nb, L), lambda i: (i, 0))
    out = pl.pallas_call(
        loss_kernel,
        out_shape=jax.ShapeDtypeStruct((1, 1), jnp.float32),
        grid=(Np // nb,),
        in_specs=[spec, spec, spec, spec],
        out_specs=pl.BlockSpec(memory_space=pltpu.MemorySpace.SMEM),
        scratch_shapes=[pltpu.SMEM((4,), jnp.float32)],
        compiler_params=_cparams(("arbitrary",)),
    )(target, pred, mask, nask)
    return out[0, 0]


# -----------------------------------------------------------------------------
# random masking (plain-JAX glue)
# TODO(synk): torch.rand / argsort / ragged per-sample gather shuffling has no clean
#             Pallas equivalent; kept in plain JAX (requires eager execution because
#             max_len_keep becomes a static shape).
# -----------------------------------------------------------------------------
def random_masking(x, m, mask_ratio, noise, training=True, exclude_columns=()):
    N, L, D = x.shape
    noise = jnp.where(m < EPS, 1.0, noise)
    if exclude_columns:
        noise = noise.at[:, jnp.asarray(exclude_columns)].set(0.0)
    ids_shuffle = jnp.argsort(noise, axis=1)
    ids_restore = jnp.argsort(ids_shuffle, axis=1)
    if training:
        eff = jnp.sum((m > EPS).astype(jnp.float32), axis=1)
        len_keep = jnp.ceil(eff * (1.0 - mask_ratio)).astype(jnp.int32)
    else:
        len_keep = jnp.ceil(jnp.sum(m, axis=1)).astype(jnp.int32)
    max_len_keep = int(jnp.max(len_keep))            # concrete (eager) -> static

    col = jnp.arange(max_len_keep)[None, :]
    keep = col < len_keep[:, None]
    ids_keep = jnp.where(keep, ids_shuffle[:, :max_len_keep], L)
    x_padded = jnp.concatenate([x, jnp.zeros((N, 1, D), x.dtype)], axis=1)
    x_masked = jnp.take_along_axis(x_padded, ids_keep[:, :, None], axis=1)

    mask = jnp.where(jnp.arange(L)[None, :] < len_keep[:, None], 0.0, 1.0)
    mask = jnp.take_along_axis(mask, ids_restore, axis=1)
    nask = 1.0 - mask
    if training:
        mask = jnp.where(m < EPS, 0.0, mask)
    attn_mask = keep.astype(jnp.float32)
    return x_masked, mask, nask, ids_restore, attn_mask


# -----------------------------------------------------------------------------
# full forward
# -----------------------------------------------------------------------------
def mae_forward(params, data, miss_idx, mask_ratio, noise,
                training=True, exclude_columns=()):
    N, _, L = data.shape
    D = params['pos_embed'].shape[-1]
    Dd = params['dec_pos_embed'].shape[-1]
    # 2-D-block kernels (embed / loss): second-minor block dim must be 8-aligned
    # or equal the batch dim.
    nb2 = N if N < 8 else 8
    # transformer-stack kernels (3-D blocks): keep >= 2 batch tiles so the
    # "parallel" axis can be split across v7x's two TensorCores.
    nb3 = max(1, min(8, N // 2)) if N > 1 else 1

    # ---------- encoder ----------
    x = mask_embed_pos(data.reshape(N, L),
                       params['conv_w'], params['conv_b'],
                       params['pos_embed'][1:], nb2)                 # (N, L, D)
    x, mask, nask, ids_restore, attn_mask = random_masking(
        x, miss_idx, mask_ratio, noise, training, exclude_columns)
    cls = params['cls_token'] + params['pos_embed'][:1]              # (1, D)
    x = jnp.concatenate([jnp.broadcast_to(cls[None, :, :], (N, 1, D)), x], axis=1)
    attn_mask = jnp.concatenate(
        [jnp.ones((N, 1), jnp.float32), attn_mask], axis=1)          # (N, K+1)

    S_enc = x.shape[1]
    xp, biasp = _pad_for_blocks(x, attn_mask, nb3)
    Sp = xp.shape[1]
    # all encoder blocks + final norm + decoder_embed in ONE pallas_call
    y_all = transformer_stack(xp, biasp, params['enc_stack'],
                              params['norm_g'], params['norm_b'],
                              params['dec_embed_w'], params['dec_embed_b'],
                              params['num_heads'], nb3,
                              _encoder_final, (Sp, Dd))
    y = y_all[:N, :S_enc]                                            # (N, K+1, Dd)

    # ---------- decoder token restore (plain-JAX glue) ----------
    n_mask_tok = ids_restore.shape[1] + 1 - y.shape[1]
    mask_tokens = jnp.broadcast_to(params['mask_token'][None, :, :],
                                   (N, n_mask_tok, Dd))
    y_ = jnp.concatenate([y[:, 1:, :], mask_tokens], axis=1)         # (N, L, Dd)
    y_ = jnp.take_along_axis(y_, ids_restore[:, :, None], axis=1)
    yd = jnp.concatenate([y[:, :1, :], y_], axis=1)                  # (N, L+1, Dd)
    yd = yd + params['dec_pos_embed'][None, :, :]

    # ---------- decoder ----------
    S_dec = yd.shape[1]
    yp, biasdp = _pad_for_blocks(yd, jnp.ones((N, S_dec), jnp.float32), nb3)
    Spd = yp.shape[1]
    # all decoder blocks + decoder_norm + decoder_pred + tanh head in ONE pallas_call
    predp = transformer_stack(yp, biasdp, params['dec_stack'],
                              params['dec_norm_g'], params['dec_norm_b'],
                              params['dec_pred_w'], params['dec_pred_b'],
                              params['dec_num_heads'], nb3,
                              _decoder_final, (1, Spd))              # (Np, 1, Spd)
    pred = predp[:N, 0, 1:S_dec]                                     # (N, L)

    # ---------- loss ----------
    target = data.reshape(N, L)
    loss = masked_mse_loss(target, pred, mask, nask, nb2)
    return loss, pred[:, :, None], mask, nask


# -----------------------------------------------------------------------------
# parameter initialization (deterministic, matches shapes from __init__)
# -----------------------------------------------------------------------------
def get_1d_sincos_pos_embed(embed_dim, length, cls_token=False):
    pos = np.arange(length, dtype=np.float64)
    omega = np.arange(embed_dim // 2, dtype=np.float64) / (embed_dim / 2.0)
    omega = 1.0 / (10000.0 ** omega)
    out = np.einsum('m,d->md', pos, omega)
    emb = np.concatenate([np.sin(out), np.cos(out)], axis=1)
    if cls_token:
        emb = np.concatenate([np.zeros((1, embed_dim)), emb], axis=0)
    return emb.astype(np.float32)


def xavier_t(key, fan_out, fan_in):
    a = float(np.sqrt(6.0 / (fan_in + fan_out)))
    w = jax.random.uniform(key, (fan_out, fan_in), jnp.float32, -a, a)
    return w.T  # stored as (in, out)


def init_stack_params(key, depth, dim, num_heads, mlp_ratio):
    hid = int(dim * mlp_ratio)
    scale = (dim // num_heads) ** -0.5
    wq, wk, wv, wp, w1, w2 = [], [], [], [], [], []
    keys = jax.random.split(key, depth)
    for d in range(depth):
        k = jax.random.split(keys[d], 4)
        wqkv = xavier_t(k[0], 3 * dim, dim)            # (dim, 3*dim), [in, out]
        wq.append(wqkv[:, :dim] * scale)               # fold 1/sqrt(hd) into Wq
        wk.append(wqkv[:, dim:2 * dim])
        wv.append(wqkv[:, 2 * dim:])
        wp.append(xavier_t(k[1], dim, dim))
        w1.append(xavier_t(k[2], hid, dim))
        w2.append(xavier_t(k[3], dim, hid))
    z = lambda c: jnp.zeros((depth, 1, c), jnp.float32)
    ones = lambda c: jnp.ones((depth, 1, c), jnp.float32)
    return dict(
        g1=ones(dim), b1=z(dim),
        wq=jnp.stack(wq).astype(jnp.bfloat16), bq=z(dim),
        wk=jnp.stack(wk).astype(jnp.bfloat16), bk=z(dim),
        wv=jnp.stack(wv).astype(jnp.bfloat16), bv=z(dim),
        wp=jnp.stack(wp).astype(jnp.bfloat16), bp=z(dim),
        g2=ones(dim), b2=z(dim),
        w1=jnp.stack(w1).astype(jnp.bfloat16), bm1=z(hid),
        w2=jnp.stack(w2).astype(jnp.bfloat16), bm2=z(dim),
    )


def init_params(key, rec_len, embed_dim, depth, num_heads,
                dec_dim, dec_depth, dec_heads, mlp_ratio):
    ks = jax.random.split(key, 8)
    p = {'num_heads': num_heads, 'dec_num_heads': dec_heads}
    # MaskEmbed: Conv1d(1, embed_dim, kernel_size=1) — xavier on (D, 1)
    a = float(np.sqrt(6.0 / (1 + embed_dim)))
    p['conv_w'] = jax.random.uniform(ks[0], (1, embed_dim), jnp.float32, -a, a)
    p['conv_b'] = jax.random.uniform(ks[1], (1, embed_dim), jnp.float32, -1.0, 1.0)
    p['cls_token'] = 0.02 * jax.random.normal(ks[2], (1, embed_dim), jnp.float32)
    p['mask_token'] = 0.02 * jax.random.normal(ks[3], (1, dec_dim), jnp.float32)
    p['pos_embed'] = jnp.asarray(get_1d_sincos_pos_embed(embed_dim, rec_len, True))
    p['dec_pos_embed'] = jnp.asarray(get_1d_sincos_pos_embed(dec_dim, rec_len, True))
    p['enc_stack'] = init_stack_params(ks[4], depth, embed_dim, num_heads, mlp_ratio)
    p['norm_g'] = jnp.ones((1, embed_dim), jnp.float32)
    p['norm_b'] = jnp.zeros((1, embed_dim), jnp.float32)
    p['dec_embed_w'] = xavier_t(ks[5], dec_dim, embed_dim).astype(jnp.bfloat16)
    p['dec_embed_b'] = jnp.zeros((1, dec_dim), jnp.float32)
    p['dec_stack'] = init_stack_params(ks[6], dec_depth, dec_dim, dec_heads, mlp_ratio)
    p['dec_norm_g'] = jnp.ones((1, dec_dim), jnp.float32)
    p['dec_norm_b'] = jnp.zeros((1, dec_dim), jnp.float32)
    # decoder_pred: Linear(dec_dim, 1) — stored as (1, dec_dim) for a lane reduce
    a2 = float(np.sqrt(6.0 / (dec_dim + 1)))
    p['dec_pred_w'] = jax.random.uniform(ks[7], (1, dec_dim), jnp.float32, -a2, a2)
    p['dec_pred_b'] = jnp.zeros((1, 1), jnp.float32)
    return p


# -----------------------------------------------------------------------------
if __name__ == "__main__":
    # small config consistent with the module defaults
    rec_len, embed_dim, depth, num_heads = 16, 32, 2, 4
    dec_dim, dec_depth, dec_heads = 32, 1, 4
    mlp_ratio = 4.0
    N = 2

    key = jax.random.PRNGKey(0)
    k_param, k_data, k_noise = jax.random.split(key, 3)
    params = init_params(k_param, rec_len, embed_dim, depth, num_heads,
                         dec_dim, dec_depth, dec_heads, mlp_ratio)

    data = jax.random.normal(k_data, (N, 1, rec_len), jnp.float32)   # [N, 1, L]
    miss_idx = jnp.ones((N, rec_len), jnp.float32)                   # [N, L]
    noise = jax.random.uniform(k_noise, (N, rec_len), jnp.float32)   # torch.rand stand-in

    loss, pred, mask, nask = mae_forward(params, data, miss_idx,
                                         mask_ratio=0.5, noise=noise, training=True)
    jax.block_until_ready((loss, pred, mask, nask))
    assert pred.shape == (N, rec_len, 1)
    assert bool(jnp.isfinite(loss))
    print("KERNEL_OK")
</pallas_src>

<mosaic_0001>
module attributes {stable_mosaic.version = 11 : i64} {
  func.func @embed_kernel(%arg0: i32, %arg1: memref<2x16xf32, #tpu.memory_space<vmem>>, %arg2: memref<1x32xf32, #tpu.memory_space<vmem>>, %arg3: memref<1x32xf32, #tpu.memory_space<vmem>>, %arg4: memref<16x32xf32, #tpu.memory_space<vmem>>, %arg5: memref<2x16x32xf32, #tpu.memory_space<vmem>>) attributes {dimension_semantics = [#tpu.dimension_semantics<parallel>], iteration_bounds = array<i64: 1>, scalar_prefetch = 0 : i64, scratch_operands = 0 : i64, tpu.core_type = #tpu.core_type<tc>, window_params = [{transform_indices = @transform_0, window_bounds = array<i64: 2, 16>}, {pipeline_mode = #tpu.pipeline_mode<synchronous>, transform_indices = @transform_1, window_bounds = array<i64: 1, 32>}, {pipeline_mode = #tpu.pipeline_mode<synchronous>, transform_indices = @transform_2, window_bounds = array<i64: 1, 32>}, {pipeline_mode = #tpu.pipeline_mode<synchronous>, transform_indices = @transform_3, window_bounds = array<i64: 16, 32>}, {transform_indices = @transform_4, window_bounds = array<i64: 2, 16, 32>}]} {
    %c0 = arith.constant 0 : index
    %c0_0 = arith.constant 0 : index
    %0 = vector.load %arg1[%c0, %c0_0] : memref<2x16xf32, #tpu.memory_space<vmem>>, vector<2x16xf32>
    %1 = vector.shape_cast %0 : vector<2x16xf32> to vector<2x16x1xf32>
    %c0_1 = arith.constant 0 : index
    %c0_2 = arith.constant 0 : index
    %2 = vector.load %arg2[%c0_1, %c0_2] : memref<1x32xf32, #tpu.memory_space<vmem>>, vector<1x32xf32>
    %3 = vector.shape_cast %2 : vector<1x32xf32> to vector<1x1x32xf32>
    %4 = vector.broadcast %1 : vector<2x16x1xf32> to vector<2x16x32xf32>
    %5 = vector.broadcast %3 : vector<1x1x32xf32> to vector<2x16x32xf32>
    %6 = arith.mulf %4, %5 : vector<2x16x32xf32>
    %c0_3 = arith.constant 0 : index
    %c0_4 = arith.constant 0 : index
    %7 = vector.load %arg3[%c0_3, %c0_4] : memref<1x32xf32, #tpu.memory_space<vmem>>, vector<1x32xf32>
    %8 = vector.shape_cast %7 : vector<1x32xf32> to vector<1x1x32xf32>
    %9 = vector.broadcast %8 : vector<1x1x32xf32> to vector<2x16x32xf32>
    %10 = arith.addf %6, %9 : vector<2x16x32xf32>
    %c0_5 = arith.constant 0 : index
    %c0_6 = arith.constant 0 : index
    %11 = vector.load %arg4[%c0_5, %c0_6] : memref<16x32xf32, #tpu.memory_space<vmem>>, vector<16x32xf32>
    %12 = vector.shape_cast %11 : vector<16x32xf32> to vector<1x16x32xf32>
    %13 = vector.broadcast %12 : vector<1x16x32xf32> to vector<2x16x32xf32>
    %14 = arith.addf %10, %13 : vector<2x16x32xf32>
    %c0_7 = arith.constant 0 : index
    %c0_8 = arith.constant 0 : index
    %c0_9 = arith.constant 0 : index
    %15 = vector.load %arg5[%c0_7, %c0_8, %c0_9] : memref<2x16x32xf32, #tpu.memory_space<vmem>>, vector<2x16x32xf32>
    tpu.vector_store %arg5[%c0_7, %c0_8, %c0_9], %14 {strides = array<i32>} : memref<2x16x32xf32, #tpu.memory_space<vmem>>, vector<2x16x32xf32>,
    return
  }
  func.func @transform_0(%arg0: i32) -> (i32, i32) {
    %c0_i32 = arith.constant 0 : i32
    %c0_i32_0 = arith.constant 0 : i32
    return %arg0, %c0_i32 : i32, i32
  }
  func.func @transform_1(%arg0: i32) -> (i32, i32) {
    %c0_i32 = arith.constant 0 : i32
    %c0_i32_0 = arith.constant 0 : i32
    %c0_i32_1 = arith.constant 0 : i32
    return %c0_i32, %c0_i32_0 : i32, i32
  }
  func.func @transform_2(%arg0: i32) -> (i32, i32) {
    %c0_i32 = arith.constant 0 : i32
    %c0_i32_0 = arith.constant 0 : i32
    %c0_i32_1 = arith.constant 0 : i32
    return %c0_i32, %c0_i32_0 : i32, i32
  }
  func.func @transform_3(%arg0: i32) -> (i32, i32) {
    %c0_i32 = arith.constant 0 : i32
    %c0_i32_0 = arith.constant 0 : i32
    %c0_i32_1 = arith.constant 0 : i32
    return %c0_i32, %c0_i32_0 : i32, i32
  }
  func.func @transform_4(%arg0: i32) -> (i32, i32, i32) {
    %c0_i32 = arith.constant 0 : i32
    %c0_i32_0 = arith.constant 0 : i32
    %c0_i32_1 = arith.constant 0 : i32
    return %arg0, %c0_i32, %c0_i32_0 : i32, i32, i32
  }
}

</mosaic_0001>

<llo_original>
// kernel: tpu_custom_call.1
$region0: #{tpu_custom_call.1}
  #allocation0 [shape = 'u32[]', space=smem, size = 0x4, offset = 0x4, fixed_abs, tag = 'smem constant byte address 0x4 - core index']
  #allocation1 [shape = 'u32[72,128]{1,0:T(1,128)}', space=vmem, size = 0x9000, scoped, tag = 'internal scratch']
  %s0 = inlined_call_operand.hbm [shape: f32[2,16], index: 0, kind: input, shape index: {}]
  %s1 = inlined_call_operand.hbm [shape: f32[1,32], index: 1, kind: input, shape index: {}]
  %s2 = inlined_call_operand.vmem [shape: f32[1,32], index: 2, kind: input, shape index: {}]
  %s3 = inlined_call_operand.hbm [shape: f32[16,32], index: 3, kind: input, shape index: {}]
  %s4 = inlined_call_operand.hbm [shape: f32[2,16,32], index: 4, kind: output, shape index: {}]
  %s5 = sld [smem:[#allocation0]]
  $region38: #{tpu_custom_call.1} parent=0
    _
  %s7 = ssub.s32 1, %s5
  %s8 = scalar_select 0, %s7, %s5
  $region1: #{tpu_custom_call.1} parent=0
    #allocation2 [shape = 'u8[1024]{0}', space=vmem, size = 0x400, scoped, tag = 'input window, operand 0, single buffered']
    #allocation3 [shape = 's32[1]{0}', space=sflag, size = 0x4, scoped, tag = 'scoped memory for tpu_custom_call.1']
    #allocation4 [shape = 's32[1]{0}', space=sflag, size = 0x4, scoped, tag = 'scoped memory for tpu_custom_call.1']
    #allocation5 [shape = 'u8[512]{0}', space=vmem, size = 0x400, scoped, tag = 'input window, operand 1, single buffered']
    #allocation6 [shape = 's32[1]{0}', space=sflag, size = 0x4, scoped, tag = 'scoped memory for tpu_custom_call.1']
    #allocation7 [shape = 'u8[8192]{0}', space=vmem, size = 0x2000, scoped, tag = 'input window, operand 3, single buffered']
    #allocation8 [shape = 'u8[16384]{0}', space=vmem, size = 0x4000, scoped, tag = 'output window, operand 0, single buffered']
    %9 = vsyncpa [#allocation3], 0
    %10 = vsyncpa [#allocation6], 0
    %11 = vsyncpa [#allocation4], 0
    // Predicated region
    $region2: #{tpu_custom_call.1} parent=1 // pred_check
      _
    $region3: #{tpu_custom_call.1} parent=1 // pred_check_branch
      %13 = sbr.rel (0) target = $region5
    $region4: #{tpu_custom_call.1} parent=1 // pred_region
      %15 = vsyncadd [#allocation3], 0
      %s17 = sshll.u32 %s0, 4
      %s18 = int_to_ptr.hbm [resolvable:$true] %s17
      %s19 = sshll.u32 [#allocation2], 4
      %s20 = int_to_ptr.vmem [resolvable:$true] %s19
      %22 = dma.hbm_to_vmem [thread:$0]  %s18, 32, %s20, [#allocation3]
    $region5: #{tpu_custom_call.1} parent=1 // pred_fallthru
      _
    // Predicated region
    $region6: #{tpu_custom_call.1} parent=1 // pred_check
      _
    $region7: #{tpu_custom_call.1} parent=1 // pred_check_branch
      %24 = sbr.rel (0) target = $region9
    $region8: #{tpu_custom_call.1} parent=1 // pred_region
      %26 = vsyncadd [#allocation6], 0
      %s28 = sshll.u32 %s1, 4
      %s29 = int_to_ptr.hbm [resolvable:$true] %s28
      %s30 = sshll.u32 [#allocation5], 4
      %s31 = int_to_ptr.vmem [resolvable:$true] %s30
      %33 = dma.hbm_to_vmem [thread:$0]  %s29, 16, %s31, [#allocation6]
    $region9: #{tpu_custom_call.1} parent=1 // pred_fallthru
      _
    // Predicated region
    $region10: #{tpu_custom_call.1} parent=1 // pred_check
      _
    $region11: #{tpu_custom_call.1} parent=1 // pred_check_branch
      %35 = sbr.rel (0) target = $region13
    $region12: #{tpu_custom_call.1} parent=1 // pred_region
      _
    $region13: #{tpu_custom_call.1} parent=1 // pred_fallthru
      _
    // Predicated region
    $region14: #{tpu_custom_call.1} parent=1 // pred_check
      _
    $region15: #{tpu_custom_call.1} parent=1 // pred_check_branch
      %37 = sbr.rel (0) target = $region17
    $region16: #{tpu_custom_call.1} parent=1 // pred_region
      %39 = vsyncadd [#allocation6], 0
      %s40 = sshll.u32 %s3, 4
      %s41 = int_to_ptr.hbm [resolvable:$true] %s40
      %s42 = sshll.u32 [#allocation7], 4
      %s43 = int_to_ptr.vmem [resolvable:$true] %s42
      %48 = dma.hbm_to_vmem [thread:$0]  %s41, 256, %s43, [#allocation6], 128, 128, 8
    $region17: #{tpu_custom_call.1} parent=1 // pred_fallthru
      _
    // Predicated region
    $region18: #{tpu_custom_call.1} parent=1 // pred_check
      _
    $region19: #{tpu_custom_call.1} parent=1 // pred_check_branch
      %50 = sbr.rel (0) target = $region21
    $region20: #{tpu_custom_call.1} parent=1 // pred_region
      %52 = dma.done [#allocation3], 32
    $region21: #{tpu_custom_call.1} parent=1 // pred_fallthru
      _
    // Predicated region
    $region22: #{tpu_custom_call.1} parent=1 // pred_check
      _
    $region23: #{tpu_custom_call.1} parent=1 // pred_check_branch
      %54 = sbr.rel (0) target = $region25
    $region24: #{tpu_custom_call.1} parent=1 // pred_region
      %56 = dma.done [#allocation6], 16
    $region25: #{tpu_custom_call.1} parent=1 // pred_fallthru
      _
    // Predicated region
    $region26: #{tpu_custom_call.1} parent=1 // pred_check
      _
    $region27: #{tpu_custom_call.1} parent=1 // pred_check_branch
      %58 = sbr.rel (0) target = $region29
    $region28: #{tpu_custom_call.1} parent=1 // pred_region
      %60 = dma.done [#allocation6], 256
    $region29: #{tpu_custom_call.1} parent=1 // pred_fallthru
      _
    %v61 = vld [vmem:[#allocation2] sm:$0x3]
    %v62 = vperm.slane %v61, 0
    %v63 = vlaneseq
    %v64 = vshrl.u32 %v63, 7
    %66 = vset.pattern.permute.xlu0 %v64
    %67 = vperm.xlu0 %66, %v62
    %v68 = vpop.permute.xlu0 %67
    %v69 = vlaneseq
    %v70 = vshrl.u32 %v69, 7
    %v71 = vadd.s32 %v70, 8
    %72 = vset.pattern.permute.xlu0 %v71
    %73 = vperm.xlu0 %72, %v62
    %v74 = vpop.permute.xlu0 %73
    %v75 = vperm.slane %v61, 1
    %v76 = vlaneseq
    %v77 = vshrl.u32 %v76, 7
    %79 = vset.pattern.permute.xlu0 %v77
    %80 = vperm.xlu0 %79, %v75
    %v81 = vpop.permute.xlu0 %80
    %v82 = vlaneseq
    %v83 = vshrl.u32 %v82, 7
    %v84 = vadd.s32 %v83, 8
    %85 = vset.pattern.permute.xlu0 %v84
    %86 = vperm.xlu0 %85, %v75
    %v87 = vpop.permute.xlu0 %86
    %v88 = vld [vmem:[#allocation5] sm:$0x1]
    %v90 = vperm.slane %v88, 0
    %v92 = vmul.f32 %v68, %v90
    %v93 = vmul.f32 %v74, %v90
    %v94 = vmul.f32 %v81, %v90
    %v95 = vmul.f32 %v87, %v90
    %v96 = vld [vmem:[%s2] sm:$0x1]
    %v98 = vperm.slane %v96, 0
    %v100 = vadd.f32 %v92, %v98
    %v101 = vadd.f32 %v93, %v98
    %v102 = vadd.f32 %v94, %v98
    %v103 = vadd.f32 %v95, %v98
    %v104 = vld [vmem:[#allocation7] sm:$0xff]
    %v105 = vld [vmem:[#allocation7 + $0x8] sm:$0xff]
    %v106 = vadd.f32 %v100, %v104
    %v107 = vadd.f32 %v101, %v105
    %v108 = vadd.f32 %v102, %v104
    %v109 = vadd.f32 %v103, %v105
    %vm110 = vcmask 261120
    %111 = vst.msk [vmem:[#allocation8] sm:$0xff] %vm110, %v106
    %112 = vst.msk [vmem:[#allocation8 + $0x8] sm:$0xff] %vm110, %v107
    %113 = vst.msk [vmem:[#allocation8 + $0x10] sm:$0xff] %vm110, %v108
    %114 = vst.msk [vmem:[#allocation8 + $0x18] sm:$0xff] %vm110, %v109
    // Predicated region
    $region30: #{tpu_custom_call.1} parent=1 // pred_check
      _
    $region31: #{tpu_custom_call.1} parent=1 // pred_check_branch
      %116 = sbr.rel (0) target = $region33
    $region32: #{tpu_custom_call.1} parent=1 // pred_region
      %118 = vsyncadd [#allocation4], 0
      %s119 = sshll.u32 [#allocation8], 4
      %s120 = int_to_ptr.vmem [resolvable:$true] %s119
      %s121 = sshll.u32 %s4, 4
      %s122 = int_to_ptr.hbm [resolvable:$true] %s121
      %127 = dma.vmem_to_hbm [thread:$0]  %s120, 512, %s122, [#allocation4], 128, 128, 8
    $region33: #{tpu_custom_call.1} parent=1 // pred_fallthru
      _
    // Predicated region
    $region34: #{tpu_custom_call.1} parent=1 // pred_check
      _
    $region35: #{tpu_custom_call.1} parent=1 // pred_check_branch
      %129 = sbr.rel (0) target = $region37
    $region36: #{tpu_custom_call.1} parent=1 // pred_region
      %131 = dma.done [#allocation4], 512
    $region37: #{tpu_custom_call.1} parent=1 // pred_fallthru
      _
    %132 = vsyncpa [#allocation3], 1
    %133 = vsyncpa [#allocation6], 1
    %134 = vsyncpa [#allocation4], 1

</llo_original>
